<compile_context>
chip_gen: v6e
topology: v6e:2x2x1
jax: 0.10.0
libtpu: 0.0.40
codegen_flags: <defaults>
</compile_context>

<pallas_src>
import functools

import jax
import jax.numpy as jnp
from jax import lax
from jax.experimental import pallas as pl
from jax.experimental.pallas import tpu as pltpu

BN_EPS = 1e-5

LANE = 128      # last-dim (lane) granule
SUBLANE = 8     # second-to-last granule for f32


def _round_up(n, m):
    return (n + m - 1) // m * m


def _default_vmem_budget():
    """Generation-aware whole-problem-in-VMEM budget (~0.75 * physical VMEM):
    ~96 MiB on v5e/v6e (128 MiB), ~48 MiB on v7x (64 MiB)."""
    try:
        cap = int(pltpu.get_tpu_info().vmem_capacity_bytes)
        return max(32 * 1024 * 1024, min(int(0.75 * cap), 100 * 1024 * 1024))
    except Exception:
        return 48 * 1024 * 1024


_FUSED_VMEM_BUDGET = _default_vmem_budget()


def _fused_mlp_kernel(*refs, has_bn, b_valid, b_pad):
    """refs = [x, (w, vec) per layer ..., out].

    x: (Bp, D0p) f32.  w_i: (Din_i_p, Dout_i_p) bf16, pre-transposed.
    vec_i: (2, Dout_i_p) f32 = [gamma; beta] for BN layers (bias dropped:
    it cancels under batch-mean subtraction), or (1, Dout_i_p) = [bias] for
    the final plain-Linear layer.  `has_bn[i]` marks Linear->BN->ReLU layers.
    """
    x_ref = refs[0]
    o_ref = refs[-1]
    p_refs = refs[1:-1]

    h = x_ref[...]                                       # (Bp, D0p) f32

    need_mask = b_pad != b_valid
    if need_mask:
        row_ids = lax.broadcasted_iota(jnp.int32, (b_pad, 1), 0)
        row_mask = (row_ids < b_valid).astype(jnp.float32)
    inv_b = jnp.float32(1.0 / b_valid)

    # Padded batch rows of h are zero on entry; with the bias dropped for BN
    # layers they stay zero through the first matmul, so the stats mask can be
    # skipped for layer 0.
    rows_zero = True

    for i, layer_has_bn in enumerate(has_bn):
        w_ref = p_refs[2 * i]
        vec_ref = p_refs[2 * i + 1]
        # bf16 x bf16 MXU contraction with f32 accumulation; weights already
        # in (Din, Dout) layout so no in-kernel transpose.
        y = jnp.dot(h.astype(jnp.bfloat16), w_ref[...],
                    preferred_element_type=jnp.float32)
        if layer_has_bn:
            v = vec_ref[...]
            gamma = v[0:1, :]
            beta = v[1:2, :]
            # Two-pass batch stats (biased variance), padded rows excluded.
            ym = y if (rows_zero or not need_mask) else y * row_mask
            mean = jnp.sum(ym, axis=0, keepdims=True) * inv_b
            d = y - mean
            if need_mask:
                d = d * row_mask
            var = jnp.sum(d * d, axis=0, keepdims=True) * inv_b
            # Fold BN into a per-feature scale/shift -> 3-op epilogue.
            scale = gamma * lax.rsqrt(var + BN_EPS)
            shift = beta - mean * scale
            y = jnp.maximum(y * scale + shift, 0.0)      # affine + ReLU
            rows_zero = False                            # shift leaks into pad rows
        else:
            y = y + vec_ref[0:1, :]                      # plain Linear bias
        h = y

    o_ref[...] = h


def init_mlp_params(key, layers, end_with_activation=False):
    """Deterministic synthetic parameters matching nn.Linear / nn.BatchNorm1d."""
    n_layers = len(layers) - 1
    params = []
    for i in range(n_layers):
        din, dout = layers[i], layers[i + 1]
        key, kw, kb, kg, kbeta = jax.random.split(key, 5)
        bound = 1.0 / (din ** 0.5)
        w = jax.random.uniform(kw, (dout, din), jnp.float32, -bound, bound)
        b = jax.random.uniform(kb, (dout,), jnp.float32, -bound, bound)
        has_bn = (i != n_layers - 1) or end_with_activation
        if has_bn:
            # Perturbed from the 1/0 init so the affine path is exercised.
            gamma = 1.0 + 0.1 * jax.random.normal(kg, (dout,), jnp.float32)
            beta = 0.1 * jax.random.normal(kbeta, (dout,), jnp.float32)
        else:
            gamma, beta = None, None
        params.append({"w": w, "b": b, "gamma": gamma, "beta": beta})
    return params


def prepare_params(params):
    """One-time layout prep (off the hot path):
      * transpose each Linear weight from PyTorch (Dout, Din) to (Din, Dout),
        cast to bf16, zero-pad both dims to multiples of 128;
      * BN layers: drop the Linear bias (exactly cancelled by the batch-mean
        subtraction) and pack gamma/beta into one (2, Doutp) f32 slab;
      * last (no-BN) layer: pack the bias into a (1, Doutp) f32 slab."""
    prepared = []
    for p in params:
        w = p["w"]                                       # (Dout, Din) f32
        dout, din = w.shape
        dinp, doutp = _round_up(din, LANE), _round_up(dout, LANE)
        wt = jnp.zeros((dinp, doutp), jnp.bfloat16)
        wt = wt.at[:din, :dout].set(w.T.astype(jnp.bfloat16))
        if p.get("gamma") is not None:
            vec = jnp.zeros((2, doutp), jnp.float32)
            vec = vec.at[0, :dout].set(p["gamma"])
            vec = vec.at[0, dout:].set(1.0)              # inert pad for gamma
            vec = vec.at[1, :dout].set(p["beta"])
            prepared.append({"w": wt, "gb": vec})
        else:
            vec = jnp.zeros((1, doutp), jnp.float32).at[0, :dout].set(p["b"])
            prepared.append({"w": wt, "b": vec})
    return prepared


@functools.partial(jax.jit, static_argnames=("out_features",))
def mlp_forward(x, prepared, out_features):
    B, din = x.shape
    Bp = _round_up(B, SUBLANE)
    dinp = prepared[0]["w"].shape[0]
    doutp_last = prepared[-1]["w"].shape[1]

    # Pad activations to (sublane, lane) granules; extra rows/cols are zero.
    xp = jnp.zeros((Bp, dinp), jnp.float32).at[:B, :din].set(x)

    flat = [xp]
    has_bn = []
    vec_bytes = 0
    for p in prepared:
        if "gb" in p:
            flat += [p["w"], p["gb"]]
            vec_bytes += int(p["gb"].size) * 4
            has_bn.append(True)
        else:
            flat += [p["w"], p["b"]]
            vec_bytes += int(p["b"].size) * 4
            has_bn.append(False)

    # VMEM accounting: I/O buffers + all (bf16) weights + per-feature slabs +
    # the two simultaneously-live activations of the widest layer (h_i, y_i).
    io_bytes = Bp * dinp * 4 + Bp * doutp_last * 4
    w_bytes = sum(int(p["w"].size) * 2 for p in prepared)          # bf16
    act_bytes = max(Bp * (int(p["w"].shape[0]) + int(p["w"].shape[1])) * 4
                    for p in prepared)
    est_bytes = io_bytes + w_bytes + vec_bytes + act_bytes
    assert est_bytes <= _FUSED_VMEM_BUDGET, (
        f"fused MLP kernel needs ~{est_bytes} B of VMEM "
        f"(> budget {_FUSED_VMEM_BUDGET})"
    )  # TODO(synk): gridded, pipelined path (see header) for larger models.

    kernel = functools.partial(
        _fused_mlp_kernel, has_bn=tuple(has_bn), b_valid=B, b_pad=Bp)

    vmem_spec = pl.BlockSpec(memory_space=pltpu.MemorySpace.VMEM)
    out_p = pl.pallas_call(
        kernel,
        out_shape=jax.ShapeDtypeStruct((Bp, doutp_last), jnp.float32),
        in_specs=[vmem_spec] * len(flat),
        out_specs=vmem_spec,
        compiler_params=pltpu.CompilerParams(
            vmem_limit_bytes=_FUSED_VMEM_BUDGET),
    )(*flat)

    # Strip batch / feature padding.
    return out_p[:B, :out_features]


def mlp_reference(x, params):
    """Pure-JAX f32 reference (PyTorch layout/math, biases kept, no padding)."""
    for p in params:
        y = x @ p["w"].T + p["b"]
        if p["gamma"] is not None:
            mean = jnp.mean(y, axis=0, keepdims=True)
            var = jnp.mean((y - mean) ** 2, axis=0, keepdims=True)
            y = (y - mean) / jnp.sqrt(var + BN_EPS) * p["gamma"] + p["beta"]
            y = jnp.maximum(y, 0.0)
        x = y
    return x


if __name__ == "__main__":
    # Small shapes consistent with the module: layers=[in, hidden..., out].
    layers = [32, 64, 32, 16]
    batch = 8

    key = jax.random.PRNGKey(0)
    key, kx = jax.random.split(key)
    x = jax.random.normal(kx, (batch, layers[0]), jnp.float32)

    params = init_mlp_params(key, layers, end_with_activation=False)
    prepared = prepare_params(params)   # one-time transpose + pad + bf16 cast

    out = mlp_forward(x, prepared, out_features=layers[-1])
    out = jax.block_until_ready(out)

    ref = mlp_reference(x, params)
    assert out.shape == (batch, layers[-1])
    # Tolerance reflects deliberate bf16 MXU operands (f32 accumulation);
    # module semantics are otherwise exact (bias cancellation under BN is an
    # identity, not an approximation).
    assert jnp.allclose(out, ref, atol=5e-2, rtol=5e-2), "mismatch vs reference"

    print("KERNEL_OK")
</pallas_src>

<mosaic_0001>
module attributes {stable_mosaic.version = 11 : i64} {
  func.func @_fused_mlp_kernel(%arg0: memref<8x128xf32, #tpu.memory_space<vmem>>, %arg1: memref<128x128xbf16, #tpu.memory_space<vmem>>, %arg2: memref<2x128xf32, #tpu.memory_space<vmem>>, %arg3: memref<128x128xbf16, #tpu.memory_space<vmem>>, %arg4: memref<2x128xf32, #tpu.memory_space<vmem>>, %arg5: memref<128x128xbf16, #tpu.memory_space<vmem>>, %arg6: memref<1x128xf32, #tpu.memory_space<vmem>>, %arg7: memref<8x128xf32, #tpu.memory_space<vmem>>) attributes {dimension_semantics = [], scalar_prefetch = 0 : i64, scratch_operands = 0 : i64, tpu.core_type = #tpu.core_type<tc>} {
    %c0 = arith.constant 0 : index
    %c0_0 = arith.constant 0 : index
    %0 = vector.load %arg0[%c0, %c0_0] : memref<8x128xf32, #tpu.memory_space<vmem>>, vector<8x128xf32>
    %1 = arith.truncf %0 : vector<8x128xf32> to vector<8x128xbf16>
    %c0_1 = arith.constant 0 : index
    %c0_2 = arith.constant 0 : index
    %2 = vector.load %arg1[%c0_1, %c0_2] : memref<128x128xbf16, #tpu.memory_space<vmem>>, vector<128x128xbf16>
    %cst = arith.constant dense<0.000000e+00> : vector<8x128xf32>
    %3 = tpu.matmul %1, %2, %cst {dimension_numbers = #tpu.dot_dimension_numbers<[1], [0], [0], [1], [0, 0, 1, 1], [], []>} : vector<8x128xbf16>, vector<128x128xbf16>, vector<8x128xf32> -> vector<8x128xf32>
    %c0_3 = arith.constant 0 : index
    %c0_4 = arith.constant 0 : index
    %4 = vector.load %arg2[%c0_3, %c0_4] : memref<2x128xf32, #tpu.memory_space<vmem>>, vector<2x128xf32>
    %5 = vector.extract_strided_slice %4 {offsets = [0, 0], sizes = [1, 128], strides = [1, 1]} : vector<2x128xf32> to vector<1x128xf32>
    %6 = vector.extract_strided_slice %4 {offsets = [1, 0], sizes = [1, 128], strides = [1, 1]} : vector<2x128xf32> to vector<1x128xf32>
    %cst_5 = arith.constant dense<0.000000e+00> : vector<128xf32>
    %7 = vector.multi_reduction <add>, %3, %cst_5 [0] : vector<8x128xf32> to vector<128xf32>
    %8 = vector.shape_cast %7 : vector<128xf32> to vector<1x128xf32>
    %cst_6 = arith.constant 1.250000e-01 : f32
    %9 = vector.broadcast %cst_6 : f32 to vector<1x128xf32>
    %10 = arith.mulf %8, %9 : vector<1x128xf32>
    %11 = vector.broadcast %10 : vector<1x128xf32> to vector<8x128xf32>
    %12 = arith.subf %3, %11 : vector<8x128xf32>
    %13 = arith.mulf %12, %12 : vector<8x128xf32>
    %cst_7 = arith.constant dense<0.000000e+00> : vector<128xf32>
    %14 = vector.multi_reduction <add>, %13, %cst_7 [0] : vector<8x128xf32> to vector<128xf32>
    %15 = vector.shape_cast %14 : vector<128xf32> to vector<1x128xf32>
    %cst_8 = arith.constant 1.250000e-01 : f32
    %16 = vector.broadcast %cst_8 : f32 to vector<1x128xf32>
    %17 = arith.mulf %15, %16 : vector<1x128xf32>
    %cst_9 = arith.constant 9.99999974E-6 : f32
    %18 = vector.broadcast %cst_9 : f32 to vector<1x128xf32>
    %19 = arith.addf %17, %18 : vector<1x128xf32>
    %20 = math.rsqrt %19 : vector<1x128xf32>
    %21 = arith.mulf %5, %20 : vector<1x128xf32>
    %22 = arith.mulf %10, %21 : vector<1x128xf32>
    %23 = arith.subf %6, %22 : vector<1x128xf32>
    %24 = vector.broadcast %21 : vector<1x128xf32> to vector<8x128xf32>
    %25 = arith.mulf %3, %24 : vector<8x128xf32>
    %26 = vector.broadcast %23 : vector<1x128xf32> to vector<8x128xf32>
    %27 = arith.addf %25, %26 : vector<8x128xf32>
    %cst_10 = arith.constant 0.000000e+00 : f32
    %28 = vector.broadcast %cst_10 : f32 to vector<8x128xf32>
    %29 = arith.maximumf %27, %28 : vector<8x128xf32>
    %30 = arith.truncf %29 : vector<8x128xf32> to vector<8x128xbf16>
    %c0_11 = arith.constant 0 : index
    %c0_12 = arith.constant 0 : index
    %31 = vector.load %arg3[%c0_11, %c0_12] : memref<128x128xbf16, #tpu.memory_space<vmem>>, vector<128x128xbf16>
    %cst_13 = arith.constant dense<0.000000e+00> : vector<8x128xf32>
    %32 = tpu.matmul %30, %31, %cst_13 {dimension_numbers = #tpu.dot_dimension_numbers<[1], [0], [0], [1], [0, 0, 1, 1], [], []>} : vector<8x128xbf16>, vector<128x128xbf16>, vector<8x128xf32> -> vector<8x128xf32>
    %c0_14 = arith.constant 0 : index
    %c0_15 = arith.constant 0 : index
    %33 = vector.load %arg4[%c0_14, %c0_15] : memref<2x128xf32, #tpu.memory_space<vmem>>, vector<2x128xf32>
    %34 = vector.extract_strided_slice %33 {offsets = [0, 0], sizes = [1, 128], strides = [1, 1]} : vector<2x128xf32> to vector<1x128xf32>
    %35 = vector.extract_strided_slice %33 {offsets = [1, 0], sizes = [1, 128], strides = [1, 1]} : vector<2x128xf32> to vector<1x128xf32>
    %cst_16 = arith.constant dense<0.000000e+00> : vector<128xf32>
    %36 = vector.multi_reduction <add>, %32, %cst_16 [0] : vector<8x128xf32> to vector<128xf32>
    %37 = vector.shape_cast %36 : vector<128xf32> to vector<1x128xf32>
    %cst_17 = arith.constant 1.250000e-01 : f32
    %38 = vector.broadcast %cst_17 : f32 to vector<1x128xf32>
    %39 = arith.mulf %37, %38 : vector<1x128xf32>
    %40 = vector.broadcast %39 : vector<1x128xf32> to vector<8x128xf32>
    %41 = arith.subf %32, %40 : vector<8x128xf32>
    %42 = arith.mulf %41, %41 : vector<8x128xf32>
    %cst_18 = arith.constant dense<0.000000e+00> : vector<128xf32>
    %43 = vector.multi_reduction <add>, %42, %cst_18 [0] : vector<8x128xf32> to vector<128xf32>
    %44 = vector.shape_cast %43 : vector<128xf32> to vector<1x128xf32>
    %cst_19 = arith.constant 1.250000e-01 : f32
    %45 = vector.broadcast %cst_19 : f32 to vector<1x128xf32>
    %46 = arith.mulf %44, %45 : vector<1x128xf32>
    %cst_20 = arith.constant 9.99999974E-6 : f32
    %47 = vector.broadcast %cst_20 : f32 to vector<1x128xf32>
    %48 = arith.addf %46, %47 : vector<1x128xf32>
    %49 = math.rsqrt %48 : vector<1x128xf32>
    %50 = arith.mulf %34, %49 : vector<1x128xf32>
    %51 = arith.mulf %39, %50 : vector<1x128xf32>
    %52 = arith.subf %35, %51 : vector<1x128xf32>
    %53 = vector.broadcast %50 : vector<1x128xf32> to vector<8x128xf32>
    %54 = arith.mulf %32, %53 : vector<8x128xf32>
    %55 = vector.broadcast %52 : vector<1x128xf32> to vector<8x128xf32>
    %56 = arith.addf %54, %55 : vector<8x128xf32>
    %cst_21 = arith.constant 0.000000e+00 : f32
    %57 = vector.broadcast %cst_21 : f32 to vector<8x128xf32>
    %58 = arith.maximumf %56, %57 : vector<8x128xf32>
    %59 = arith.truncf %58 : vector<8x128xf32> to vector<8x128xbf16>
    %c0_22 = arith.constant 0 : index
    %c0_23 = arith.constant 0 : index
    %60 = vector.load %arg5[%c0_22, %c0_23] : memref<128x128xbf16, #tpu.memory_space<vmem>>, vector<128x128xbf16>
    %cst_24 = arith.constant dense<0.000000e+00> : vector<8x128xf32>
    %61 = tpu.matmul %59, %60, %cst_24 {dimension_numbers = #tpu.dot_dimension_numbers<[1], [0], [0], [1], [0, 0, 1, 1], [], []>} : vector<8x128xbf16>, vector<128x128xbf16>, vector<8x128xf32> -> vector<8x128xf32>
    %c0_25 = arith.constant 0 : index
    %c0_26 = arith.constant 0 : index
    %62 = vector.load %arg6[%c0_25, %c0_26] : memref<1x128xf32, #tpu.memory_space<vmem>>, vector<1x128xf32>
    %63 = vector.broadcast %62 : vector<1x128xf32> to vector<8x128xf32>
    %64 = arith.addf %61, %63 : vector<8x128xf32>
    %c0_27 = arith.constant 0 : index
    %c0_28 = arith.constant 0 : index
    %65 = vector.load %arg7[%c0_27, %c0_28] : memref<8x128xf32, #tpu.memory_space<vmem>>, vector<8x128xf32>
    tpu.vector_store %arg7[%c0_27, %c0_28], %64 {strides = array<i32>} : memref<8x128xf32, #tpu.memory_space<vmem>>, vector<8x128xf32>,
    return
  }
}

</mosaic_0001>

<llo_original>
// kernel: mlp_forward.1
$region0: #{mlp_forward.1}
  #allocation0 [shape = 'u32[]', space=smem, size = 0x4, offset = 0x4, fixed_abs, tag = 'smem constant byte address 0x4 - core index']
  #allocation1 [shape = 'u32[144,128]{1,0:T(1,128)}', space=vmem, size = 0x12000, scoped, tag = 'internal scratch']
  %s0 = inlined_call_operand.vmem [shape: f32[8,128], index: 0, kind: input, shape index: {}]
  %s1 = inlined_call_operand.hbm [shape: bf16[128,128], index: 1, kind: input, shape index: {}]
  %s2 = inlined_call_operand.vmem [shape: f32[2,128], index: 2, kind: input, shape index: {}]
  %s3 = inlined_call_operand.hbm [shape: bf16[128,128], index: 3, kind: input, shape index: {}]
  %s4 = inlined_call_operand.vmem [shape: f32[2,128], index: 4, kind: input, shape index: {}]
  %s5 = inlined_call_operand.hbm [shape: bf16[128,128], index: 5, kind: input, shape index: {}]
  %s6 = inlined_call_operand.vmem [shape: f32[1,128], index: 6, kind: input, shape index: {}]
  %s7 = inlined_call_operand.hbm [shape: f32[8,128], index: 7, kind: output, shape index: {}]
  %s8 = sld [smem:[#allocation0]]
  $region50: #{mlp_forward.1} parent=0
    _
  %s10 = ssub.s32 1, %s8
  %s11 = scalar_select 0, %s10, %s8
  $region1: #{mlp_forward.1} parent=0
    #allocation2 [shape = 'u8[32768]{0}', space=vmem, size = 0x8000, scoped, tag = 'input window, operand 1, single buffered']
    #allocation3 [shape = 's32[1]{0}', space=sflag, size = 0x4, scoped, tag = 'scoped memory for mlp_forward.1']
    #allocation4 [shape = 's32[1]{0}', space=sflag, size = 0x4, scoped, tag = 'scoped memory for mlp_forward.1']
    #allocation5 [shape = 'u8[32768]{0}', space=vmem, size = 0x8000, scoped, tag = 'input window, operand 3, single buffered']
    #allocation6 [shape = 's32[1]{0}', space=sflag, size = 0x4, scoped, tag = 'scoped memory for mlp_forward.1']
    #allocation7 [shape = 'u8[32768]{0}', space=vmem, size = 0x8000, scoped, tag = 'input window, operand 5, single buffered']
    #allocation8 [shape = 'u8[4096]{0}', space=vmem, size = 0x1000, scoped, tag = 'output window, operand 0, single buffered']
    %12 = vsyncpa [#allocation3], 0
    %13 = vsyncpa [#allocation6], 0
    %14 = vsyncpa [#allocation4], 0
    // Predicated region
    $region2: #{mlp_forward.1} parent=1 // pred_check
      _
    $region3: #{mlp_forward.1} parent=1 // pred_check_branch
      %16 = sbr.rel (0) target = $region5
    $region4: #{mlp_forward.1} parent=1 // pred_region
      _
    $region5: #{mlp_forward.1} parent=1 // pred_fallthru
      _
    // Predicated region
    $region6: #{mlp_forward.1} parent=1 // pred_check
      _
    $region7: #{mlp_forward.1} parent=1 // pred_check_branch
      %18 = sbr.rel (0) target = $region9
    $region8: #{mlp_forward.1} parent=1 // pred_region
      %s20 = ssub.s32 1024, 1024
      %21 = vsyncadd [#allocation3], %s20
      %s22 = sshll.u32 [#allocation2], 4
      %s23 = int_to_ptr.vmem [resolvable:$true] %s22
      %28 = dma.hbm_to_vmem [thread:$0]  %s1, 1024, %s23, [#allocation3], 64, 64, 4
    $region9: #{mlp_forward.1} parent=1 // pred_fallthru
      _
    // Predicated region
    $region10: #{mlp_forward.1} parent=1 // pred_check
      _
    $region11: #{mlp_forward.1} parent=1 // pred_check_branch
      %30 = sbr.rel (0) target = $region13
    $region12: #{mlp_forward.1} parent=1 // pred_region
      _
    $region13: #{mlp_forward.1} parent=1 // pred_fallthru
      _
    // Predicated region
    $region14: #{mlp_forward.1} parent=1 // pred_check
      _
    $region15: #{mlp_forward.1} parent=1 // pred_check_branch
      %32 = sbr.rel (0) target = $region17
    $region16: #{mlp_forward.1} parent=1 // pred_region
      %s34 = ssub.s32 1024, 1024
      %35 = vsyncadd [#allocation6], %s34
      %s36 = sshll.u32 [#allocation5], 4
      %s37 = int_to_ptr.vmem [resolvable:$true] %s36
      %42 = dma.hbm_to_vmem [thread:$0]  %s3, 1024, %s37, [#allocation6], 64, 64, 4
    $region17: #{mlp_forward.1} parent=1 // pred_fallthru
      _
    // Predicated region
    $region18: #{mlp_forward.1} parent=1 // pred_check
      _
    $region19: #{mlp_forward.1} parent=1 // pred_check_branch
      %44 = sbr.rel (0) target = $region21
    $region20: #{mlp_forward.1} parent=1 // pred_region
      _
    $region21: #{mlp_forward.1} parent=1 // pred_fallthru
      _
    // Predicated region
    $region22: #{mlp_forward.1} parent=1 // pred_check
      _
    $region23: #{mlp_forward.1} parent=1 // pred_check_branch
      %46 = sbr.rel (0) target = $region25
    $region24: #{mlp_forward.1} parent=1 // pred_region
      %s48 = ssub.s32 1024, 1024
      %49 = vsyncadd [#allocation6], %s48
      %s50 = sshll.u32 [#allocation7], 4
      %s51 = int_to_ptr.vmem [resolvable:$true] %s50
      %56 = dma.hbm_to_vmem [thread:$0]  %s5, 1024, %s51, [#allocation6], 64, 64, 4
    $region25: #{mlp_forward.1} parent=1 // pred_fallthru
      _
    // Predicated region
    $region26: #{mlp_forward.1} parent=1 // pred_check
      _
    $region27: #{mlp_forward.1} parent=1 // pred_check_branch
      %58 = sbr.rel (0) target = $region29
    $region28: #{mlp_forward.1} parent=1 // pred_region
      _
    $region29: #{mlp_forward.1} parent=1 // pred_fallthru
      _
    // Predicated region
    $region30: #{mlp_forward.1} parent=1 // pred_check
      _
    $region31: #{mlp_forward.1} parent=1 // pred_check_branch
      %60 = sbr.rel (0) target = $region33
    $region32: #{mlp_forward.1} parent=1 // pred_region
      %61 = dma.done [#allocation3], 1024
    $region33: #{mlp_forward.1} parent=1 // pred_fallthru
      _
    // Predicated region
    $region34: #{mlp_forward.1} parent=1 // pred_check
      _
    $region35: #{mlp_forward.1} parent=1 // pred_check_branch
      %63 = sbr.rel (0) target = $region37
    $region36: #{mlp_forward.1} parent=1 // pred_region
      %64 = dma.done [#allocation6], 1024
    $region37: #{mlp_forward.1} parent=1 // pred_fallthru
      _
    // Predicated region
    $region38: #{mlp_forward.1} parent=1 // pred_check
      _
    $region39: #{mlp_forward.1} parent=1 // pred_check_branch
      %66 = sbr.rel (0) target = $region41
    $region40: #{mlp_forward.1} parent=1 // pred_region
      %67 = dma.done [#allocation6], 1024
    $region41: #{mlp_forward.1} parent=1 // pred_fallthru
      _
    %v69 = vld [vmem:[%s0] sm:$0xff]
    %v70 = vpack.c.bf16 %v69, %v69
    %v71 = vld [vmem:[#allocation2] sm:$0xf]
    %v72 = vld [vmem:[#allocation2 + $0x4] sm:$0xf]
    %v73 = vld [vmem:[#allocation2 + $0x8] sm:$0xf]
    %v74 = vld [vmem:[#allocation2 + $0xc] sm:$0xf]
    %v75 = vld [vmem:[#allocation2 + $0x10] sm:$0xf]
    %v76 = vld [vmem:[#allocation2 + $0x14] sm:$0xf]
    %v77 = vld [vmem:[#allocation2 + $0x18] sm:$0xf]
    %v78 = vld [vmem:[#allocation2 + $0x1c] sm:$0xf]
    %v79 = vld [vmem:[#allocation2 + $0x20] sm:$0xf]
    %v80 = vld [vmem:[#allocation2 + $0x24] sm:$0xf]
    %v81 = vld [vmem:[#allocation2 + $0x28] sm:$0xf]
    %v82 = vld [vmem:[#allocation2 + $0x2c] sm:$0xf]
    %v83 = vld [vmem:[#allocation2 + $0x30] sm:$0xf]
    %v84 = vld [vmem:[#allocation2 + $0x34] sm:$0xf]
    %v85 = vld [vmem:[#allocation2 + $0x38] sm:$0xf]
    %v86 = vld [vmem:[#allocation2 + $0x3c] sm:$0xf]
    %v103 = vunpack.c.l.b16 %v71
    %v104 = vunpack.c.l.b16 %v72
    %v105 = vunpack.c.l.b16 %v73
    %v106 = vunpack.c.l.b16 %v74
    %v107 = vunpack.c.l.b16 %v75
    %v108 = vunpack.c.l.b16 %v76
    %v109 = vunpack.c.l.b16 %v77
    %v110 = vunpack.c.l.b16 %v78
    %v111 = vunpack.c.l.b16 %v79
    %v112 = vunpack.c.l.b16 %v80
    %v113 = vunpack.c.l.b16 %v81
    %v114 = vunpack.c.l.b16 %v82
    %v115 = vunpack.c.l.b16 %v83
    %v116 = vunpack.c.l.b16 %v84
    %v117 = vunpack.c.l.b16 %v85
    %v118 = vunpack.c.l.b16 %v86
    %v119 = vpack.c.b16 %v104, %v103
    %v120 = vpack.c.b16 %v106, %v105
    %v121 = vpack.c.b16 %v108, %v107
    %v122 = vpack.c.b16 %v110, %v109
    %v123 = vpack.c.b16 %v112, %v111
    %v124 = vpack.c.b16 %v114, %v113
    %v125 = vpack.c.b16 %v116, %v115
    %v126 = vpack.c.b16 %v118, %v117
    %135 = vmatprep.subr.bf16.mxu0 0
    %136 = vmatpush1.bf16.msra.mxu0 %v126
    %137 = vmatprep.subr.bf16.mxu0 0
    %138 = vmatpush1.bf16.msra.mxu0 %v125
    %139 = vmatprep.subr.bf16.mxu0 0
    %140 = vmatpush1.bf16.msra.mxu0 %v124
    %141 = vmatprep.subr.bf16.mxu0 0
    %142 = vmatpush1.bf16.msra.mxu0 %v123
    %143 = vmatprep.subr.bf16.mxu0 0
    %144 = vmatpush1.bf16.msra.mxu0 %v122
    %145 = vmatprep.subr.bf16.mxu0 0
    %146 = vmatpush1.bf16.msra.mxu0 %v121
    %147 = vmatprep.subr.bf16.mxu0 0
    %148 = vmatpush1.bf16.msra.mxu0 %v120
    %149 = vmatprep.subr.bf16.mxu0 0
    %150 = vmatpush1.bf16.msra.mxu0 %v119
    %151 = vmatprep.subr.bf16.mxu0 0
    %152 = vmatpush2.bf16.msra.mxu0 0
    %153 = vmatprep.subr.bf16.mxu0 0
    %154 = vmatpush2.bf16.msra.mxu0 0
    %155 = vmatprep.subr.bf16.mxu0 0
    %156 = vmatpush2.bf16.msra.mxu0 0
    %157 = vmatprep.subr.bf16.mxu0 0
    %158 = vmatpush2.bf16.msra.mxu0 0
    %159 = vmatprep.subr.bf16.mxu0 0
    %160 = vmatpush2.bf16.msra.mxu0 0
    %161 = vmatprep.subr.bf16.mxu0 0
    %162 = vmatpush2.bf16.msra.mxu0 0
    %163 = vmatprep.subr.bf16.mxu0 0
    %164 = vmatpush2.bf16.msra.mxu0 0
    %165 = vmatprep.subr.bf16.mxu0 0
    %166 = vmatpush2.bf16.msra.mxu0 0
    %167 = vmatprep.mubr.bf16.mxu0 0
    %168 = vmatmul.mubr.bf16.gmra.mxu0 %v70
    %v169 = vpop.f32.mrf.mxu0
    %v170 = vadd.f32 0.0, %v169
    %v171 = vpop.f32.mrf.mxu0
    %v172 = vpop.f32.mrf.mxu0
    %v173 = vpop.f32.mrf.mxu0
    %174 = vdwg.mxu0
    %v175 = vld [vmem:[%s2] sm:$0x3]
    %v176 = vrot.slane %v170, 4
    %v177 = vadd.f32 %v170, %v176
    %v178 = vrot.slane %v177, 2
    %v179 = vadd.f32 %v177, %v178
    %v180 = vrot.slane %v179, 1
    %v181 = vadd.f32 %v179, %v180
    %v182 = vmul.f32 %v181, 0.125
    %v183 = vsub.f32 %v170, %v182
    %v184 = vmul.f32 %v183, %v183
    %v185 = vrot.slane %v184, 4
    %v186 = vadd.f32 %v184, %v185
    %v187 = vrot.slane %v186, 2
    %v188 = vadd.f32 %v186, %v187
    %v189 = vrot.slane %v188, 1
    %v190 = vadd.f32 %v188, %v189
    %v191 = vmul.f32 %v190, 0.125
    %v192 = vadd.f32 %v191, 1e-05
    %v193 = vrsqrt.pop %v192
    %v194 = vmul.f32 %v175, %v193
    %v195 = vmul.f32 %v182, %v194
    %v197 = vrot.slane %v195, 7
    %v199 = vsub.f32 %v175, %v197
    %v200 = vlaneseq
    %v201 = vshrl.u32 %v200, 7
    %v202 = vsub.s32 0, %v201
    %v203 = vrot.slane %v194, %v202
    %v204 = vmul.f32 %v170, %v203
    %v205 = vlaneseq
    %v206 = vshrl.u32 %v205, 7
    %v207 = vsub.s32 1, %v206
    %v208 = vrot.slane %v199, %v207
    %v209 = vadd.f32 %v204, %v208
    %v210 = vmax.f32 %v209, 0.0
    %v211 = vpack.c.bf16 %v210, %v210
    %v212 = vld [vmem:[#allocation5] sm:$0xf]
    %v213 = vld [vmem:[#allocation5 + $0x4] sm:$0xf]
    %v214 = vld [vmem:[#allocation5 + $0x8] sm:$0xf]
    %v215 = vld [vmem:[#allocation5 + $0xc] sm:$0xf]
    %v216 = vld [vmem:[#allocation5 + $0x10] sm:$0xf]
    %v217 = vld [vmem:[#allocation5 + $0x14] sm:$0xf]
    %v218 = vld [vmem:[#allocation5 + $0x18] sm:$0xf]
    %v219 = vld [vmem:[#allocation5 + $0x1c] sm:$0xf]
    %v220 = vld [vmem:[#allocation5 + $0x20] sm:$0xf]
    %v221 = vld [vmem:[#allocation5 + $0x24] sm:$0xf]
    %v222 = vld [vmem:[#allocation5 + $0x28] sm:$0xf]
    %v223 = vld [vmem:[#allocation5 + $0x2c] sm:$0xf]
    %v224 = vld [vmem:[#allocation5 + $0x30] sm:$0xf]
    %v225 = vld [vmem:[#allocation5 + $0x34] sm:$0xf]
    %v226 = vld [vmem:[#allocation5 + $0x38] sm:$0xf]
    %v227 = vld [vmem:[#allocation5 + $0x3c] sm:$0xf]
    %v244 = vunpack.c.l.b16 %v212
    %v245 = vunpack.c.l.b16 %v213
    %v246 = vunpack.c.l.b16 %v214
    %v247 = vunpack.c.l.b16 %v215
    %v248 = vunpack.c.l.b16 %v216
    %v249 = vunpack.c.l.b16 %v217
    %v250 = vunpack.c.l.b16 %v218
    %v251 = vunpack.c.l.b16 %v219
    %v252 = vunpack.c.l.b16 %v220
    %v253 = vunpack.c.l.b16 %v221
    %v254 = vunpack.c.l.b16 %v222
    %v255 = vunpack.c.l.b16 %v223
    %v256 = vunpack.c.l.b16 %v224
    %v257 = vunpack.c.l.b16 %v225
    %v258 = vunpack.c.l.b16 %v226
    %v259 = vunpack.c.l.b16 %v227
    %v260 = vpack.c.b16 %v245, %v244
    %v261 = vpack.c.b16 %v247, %v246
    %v262 = vpack.c.b16 %v249, %v248
    %v263 = vpack.c.b16 %v251, %v250
    %v264 = vpack.c.b16 %v253, %v252
    %v265 = vpack.c.b16 %v255, %v254
    %v266 = vpack.c.b16 %v257, %v256
    %v267 = vpack.c.b16 %v259, %v258
    %276 = vmatprep.subr.bf16.mxu0 0
    %277 = vmatpush1.bf16.msra.mxu0 %v267
    %278 = vmatprep.subr.bf16.mxu0 0
    %279 = vmatpush1.bf16.msra.mxu0 %v266
    %280 = vmatprep.subr.bf16.mxu0 0
    %281 = vmatpush1.bf16.msra.mxu0 %v265
    %282 = vmatprep.subr.bf16.mxu0 0
    %283 = vmatpush1.bf16.msra.mxu0 %v264
    %284 = vmatprep.subr.bf16.mxu0 0
    %285 = vmatpush1.bf16.msra.mxu0 %v263
    %286 = vmatprep.subr.bf16.mxu0 0
    %287 = vmatpush1.bf16.msra.mxu0 %v262
    %288 = vmatprep.subr.bf16.mxu0 0
    %289 = vmatpush1.bf16.msra.mxu0 %v261
    %290 = vmatprep.subr.bf16.mxu0 0
    %291 = vmatpush1.bf16.msra.mxu0 %v260
    %292 = vmatprep.subr.bf16.mxu0 0
    %293 = vmatpush2.bf16.msra.mxu0 0
    %294 = vmatprep.subr.bf16.mxu0 0
    %295 = vmatpush2.bf16.msra.mxu0 0
    %296 = vmatprep.subr.bf16.mxu0 0
    %297 = vmatpush2.bf16.msra.mxu0 0
    %298 = vmatprep.subr.bf16.mxu0 0
    %299 = vmatpush2.bf16.msra.mxu0 0
    %300 = vmatprep.subr.bf16.mxu0 0
    %301 = vmatpush2.bf16.msra.mxu0 0
    %302 = vmatprep.subr.bf16.mxu0 0
    %303 = vmatpush2.bf16.msra.mxu0 0
    %304 = vmatprep.subr.bf16.mxu0 0
    %305 = vmatpush2.bf16.msra.mxu0 0
    %306 = vmatprep.subr.bf16.mxu0 0
    %307 = vmatpush2.bf16.msra.mxu0 0
    %308 = vmatprep.mubr.bf16.mxu0 0
    %309 = vmatmul.mubr.bf16.gmra.mxu0 %v211
    %v310 = vpop.f32.mrf.mxu0
    %v311 = vadd.f32 0.0, %v310
    %v312 = vpop.f32.mrf.mxu0
    %v313 = vpop.f32.mrf.mxu0
    %v314 = vpop.f32.mrf.mxu0
    %315 = vdwg.mxu0
    %v316 = vld [vmem:[%s4] sm:$0x3]
    %v317 = vrot.slane %v311, 4
    %v318 = vadd.f32 %v311, %v317
    %v319 = vrot.slane %v318, 2
    %v320 = vadd.f32 %v318, %v319
    %v321 = vrot.slane %v320, 1
    %v322 = vadd.f32 %v320, %v321
    %v323 = vmul.f32 %v322, 0.125
    %v324 = vsub.f32 %v311, %v323
    %v325 = vmul.f32 %v324, %v324
    %v326 = vrot.slane %v325, 4
    %v327 = vadd.f32 %v325, %v326
    %v328 = vrot.slane %v327, 2
    %v329 = vadd.f32 %v327, %v328
    %v330 = vrot.slane %v329, 1
    %v331 = vadd.f32 %v329, %v330
    %v332 = vmul.f32 %v331, 0.125
    %v333 = vadd.f32 %v332, 1e-05
    %v334 = vrsqrt.pop %v333
    %v335 = vmul.f32 %v316, %v334
    %v336 = vmul.f32 %v323, %v335
    %v338 = vrot.slane %v336, 7
    %v340 = vsub.f32 %v316, %v338
    %v341 = vlaneseq
    %v342 = vshrl.u32 %v341, 7
    %v343 = vsub.s32 0, %v342
    %v344 = vrot.slane %v335, %v343
    %v345 = vmul.f32 %v311, %v344
    %v346 = vlaneseq
    %v347 = vshrl.u32 %v346, 7
    %v348 = vsub.s32 1, %v347
    %v349 = vrot.slane %v340, %v348
    %v350 = vadd.f32 %v345, %v349
    %v351 = vmax.f32 %v350, 0.0
    %v352 = vpack.c.bf16 %v351, %v351
    %v353 = vld [vmem:[#allocation7] sm:$0xf]
    %v354 = vld [vmem:[#allocation7 + $0x4] sm:$0xf]
    %v355 = vld [vmem:[#allocation7 + $0x8] sm:$0xf]
    %v356 = vld [vmem:[#allocation7 + $0xc] sm:$0xf]
    %v357 = vld [vmem:[#allocation7 + $0x10] sm:$0xf]
    %v358 = vld [vmem:[#allocation7 + $0x14] sm:$0xf]
    %v359 = vld [vmem:[#allocation7 + $0x18] sm:$0xf]
    %v360 = vld [vmem:[#allocation7 + $0x1c] sm:$0xf]
    %v361 = vld [vmem:[#allocation7 + $0x20] sm:$0xf]
    %v362 = vld [vmem:[#allocation7 + $0x24] sm:$0xf]
    %v363 = vld [vmem:[#allocation7 + $0x28] sm:$0xf]
    %v364 = vld [vmem:[#allocation7 + $0x2c] sm:$0xf]
    %v365 = vld [vmem:[#allocation7 + $0x30] sm:$0xf]
    %v366 = vld [vmem:[#allocation7 + $0x34] sm:$0xf]
    %v367 = vld [vmem:[#allocation7 + $0x38] sm:$0xf]
    %v368 = vld [vmem:[#allocation7 + $0x3c] sm:$0xf]
    %v369 = vld [vmem:[%s6] sm:$0x1]
    %v371 = vlaneseq
    %v372 = vshrl.u32 %v371, 7
    %v373 = vsub.s32 0, %v372
    %v374 = vrot.slane %v369, %v373
    %v392 = vunpack.c.l.b16 %v353
    %v393 = vunpack.c.l.b16 %v354
    %v394 = vunpack.c.l.b16 %v355
    %v395 = vunpack.c.l.b16 %v356
    %v396 = vunpack.c.l.b16 %v357
    %v397 = vunpack.c.l.b16 %v358
    %v398 = vunpack.c.l.b16 %v359
    %v399 = vunpack.c.l.b16 %v360
    %v400 = vunpack.c.l.b16 %v361
    %v401 = vunpack.c.l.b16 %v362
    %v402 = vunpack.c.l.b16 %v363
    %v403 = vunpack.c.l.b16 %v364
    %v404 = vunpack.c.l.b16 %v365
    %v405 = vunpack.c.l.b16 %v366
    %v406 = vunpack.c.l.b16 %v367
    %v407 = vunpack.c.l.b16 %v368
    %v408 = vpack.c.b16 %v393, %v392
    %v409 = vpack.c.b16 %v395, %v394
    %v410 = vpack.c.b16 %v397, %v396
    %v411 = vpack.c.b16 %v399, %v398
    %v412 = vpack.c.b16 %v401, %v400
    %v413 = vpack.c.b16 %v403, %v402
    %v414 = vpack.c.b16 %v405, %v404
    %v415 = vpack.c.b16 %v407, %v406
    %424 = vmatprep.subr.bf16.mxu0 0
    %425 = vmatpush1.bf16.msra.mxu0 %v415
    %426 = vmatprep.subr.bf16.mxu0 0
    %427 = vmatpush1.bf16.msra.mxu0 %v414
    %428 = vmatprep.subr.bf16.mxu0 0
    %429 = vmatpush1.bf16.msra.mxu0 %v413
    %430 = vmatprep.subr.bf16.mxu0 0
    %431 = vmatpush1.bf16.msra.mxu0 %v412
    %432 = vmatprep.subr.bf16.mxu0 0
    %433 = vmatpush1.bf16.msra.mxu0 %v411
    %434 = vmatprep.subr.bf16.mxu0 0
    %435 = vmatpush1.bf16.msra.mxu0 %v410
    %436 = vmatprep.subr.bf16.mxu0 0
    %437 = vmatpush1.bf16.msra.mxu0 %v409
    %438 = vmatprep.subr.bf16.mxu0 0
    %439 = vmatpush1.bf16.msra.mxu0 %v408
    %440 = vmatprep.subr.bf16.mxu0 0
    %441 = vmatpush2.bf16.msra.mxu0 0
    %442 = vmatprep.subr.bf16.mxu0 0
    %443 = vmatpush2.bf16.msra.mxu0 0
    %444 = vmatprep.subr.bf16.mxu0 0
    %445 = vmatpush2.bf16.msra.mxu0 0
    %446 = vmatprep.subr.bf16.mxu0 0
    %447 = vmatpush2.bf16.msra.mxu0 0
    %448 = vmatprep.subr.bf16.mxu0 0
    %449 = vmatpush2.bf16.msra.mxu0 0
    %450 = vmatprep.subr.bf16.mxu0 0
    %451 = vmatpush2.bf16.msra.mxu0 0
    %452 = vmatprep.subr.bf16.mxu0 0
    %453 = vmatpush2.bf16.msra.mxu0 0
    %454 = vmatprep.subr.bf16.mxu0 0
    %455 = vmatpush2.bf16.msra.mxu0 0
    %456 = vmatprep.mubr.bf16.mxu0 0
    %457 = vmatmul.mubr.bf16.gmra.mxu0 %v352
    %v458 = vpop.f32.mrf.mxu0
    %v459 = vadd.f32 %v374, %v458
    %v460 = vpop.f32.mrf.mxu0
    %v461 = vpop.f32.mrf.mxu0
    %v462 = vpop.f32.mrf.mxu0
    %463 = vdwg.mxu0
    %464 = vst [vmem:[#allocation8] sm:$0xff] %v459
    // Predicated region
    $region42: #{mlp_forward.1} parent=1 // pred_check
      _
    $region43: #{mlp_forward.1} parent=1 // pred_check_branch
      %466 = sbr.rel (0) target = $region45
    $region44: #{mlp_forward.1} parent=1 // pred_region
      %s468 = ssub.s32 128, 128
      %469 = vsyncadd [#allocation4], %s468
      %s471 = sshll.u32 [#allocation8], 4
      %s472 = int_to_ptr.vmem [resolvable:$true] %s471
      %474 = dma.vmem_to_hbm [thread:$0]  %s472, 128, %s7, [#allocation4]
    $region45: #{mlp_forward.1} parent=1 // pred_fallthru
      _
    // Predicated region
    $region46: #{mlp_forward.1} parent=1 // pred_check
      _
    $region47: #{mlp_forward.1} parent=1 // pred_check_branch
      %476 = sbr.rel (0) target = $region49
    $region48: #{mlp_forward.1} parent=1 // pred_region
      %477 = dma.done [#allocation4], 128
    $region49: #{mlp_forward.1} parent=1 // pred_fallthru
      _
    %478 = vsyncpa [#allocation3], 1
    %479 = vsyncpa [#allocation6], 1
    %480 = vsyncpa [#allocation4], 1

</llo_original>
